<compile_context>
chip_gen: v5e
topology: v5e:2x2
jax: 0.10.0
libtpu: 0.0.40
codegen_flags: <defaults>
</compile_context>

<pallas_src>
import functools

import jax
import jax.numpy as jnp
from jax.experimental import pallas as pl
from jax.experimental.pallas import tpu as pltpu

NUM_GROUPS = 32
EPS = 1e-5


def _round_up(x, m):
    return (x + m - 1) // m * m


def _vmem_limit(need_bytes):
    # Size the scoped-VMEM request from actual need (+33% + 4 MiB headroom for
    # compiler-internal scratch) instead of requesting 64 MiB everywhere.
    # Floor 24 MiB (plenty of double-buffer headroom, still <40% of a v7x TC),
    # cap 96 MiB (75% of v5e/v6e physical VMEM).
    return int(min(max(need_bytes + need_bytes // 3 + (4 << 20), 24 << 20), 96 << 20))


# ---------------------------------------------------------------------------
# Pass 1: per-channel sum / sumsq over HW, lane-parallel partial accumulation.
# ---------------------------------------------------------------------------
def _gn_stats_kernel(x_ref, sum_ref, sq_ref, *, n_chunks):
    @pl.when(pl.program_id(1) == 0)
    def _():
        sum_ref[...] = jnp.zeros_like(sum_ref)
        sq_ref[...] = jnp.zeros_like(sq_ref)

    x = x_ref[0].astype(jnp.float32)          # (C, t_big)
    s = sum_ref[0]                            # (C, 128) lane-parallel partials
    q = sq_ref[0]
    # Static, 128-lane-aligned column chunks: pure VPU adds, no XLU row-reduce
    # in the hot loop (the cross-lane reduce happens once, in JAX, per call).
    for j in range(n_chunks):
        chunk = x[:, j * 128:(j + 1) * 128]
        s = s + chunk
        q = q + chunk * chunk
    sum_ref[0] = s
    sq_ref[0] = q


# ---------------------------------------------------------------------------
# Pass 2: GroupNorm-apply + QKV projection (once per spatial position).
# ---------------------------------------------------------------------------
def _gn_qkv_kernel(x_ref, scale_ref, bias_ref, w_ref, b_ref, qkv_ref):
    xn = x_ref[0].astype(jnp.float32) * scale_ref[0] + bias_ref[0]       # (C, t)
    qkv = jnp.dot(w_ref[...], xn.astype(jnp.bfloat16),
                  preferred_element_type=jnp.float32)                    # (3C, t)
    qkv_ref[0] = (qkv + b_ref[...]).astype(jnp.bfloat16)


# ---------------------------------------------------------------------------
# Pass 3: flash attention over VMEM-resident K/V + out-projection + residual.
# ---------------------------------------------------------------------------
def _attn_kernel(x_ref, q_ref, k_ref, v_ref, w_out_ref, b_out_ref, o_ref,
                 m_s, l_s, acc_s, *, tile_kv, num_kv, hw_real, needs_mask):
    q_c = q_ref[0]                            # (C, tq) bf16, 1/sqrt(C) pre-folded

    m_s[...] = jnp.full_like(m_s, -1e30)
    l_s[...] = jnp.zeros_like(l_s)
    acc_s[...] = jnp.zeros_like(acc_s)

    def kv_step(ki, carry):
        off = pl.multiple_of(ki * tile_kv, 128)
        k_c = k_ref[0, :, pl.ds(off, tile_kv)]                           # (C, tk)
        v_c = v_ref[0, :, pl.ds(off, tile_kv)]                           # (C, tk)
        # scores = Q^T K with both operands channel-major: contract dim 0 of
        # both (native transposed-LHS MXU matmul, no materialized transpose).
        s = jax.lax.dot_general(q_c, k_c, (((0,), (0,)), ((), ())),
                                preferred_element_type=jnp.float32)      # (tq, tk)
        if needs_mask:
            col = jax.lax.broadcasted_iota(jnp.int32, s.shape, 1) + off
            s = jnp.where(col < hw_real, s, -1e30)

        m_prev = m_s[...]
        m_new = jnp.maximum(m_prev, jnp.max(s, axis=1, keepdims=True))   # (tq, 1)
        alpha = jnp.exp(m_prev - m_new)
        p = jnp.exp(s - m_new)                                           # (tq, tk)
        l_s[...] = alpha * l_s[...] + jnp.sum(p, axis=1, keepdims=True)
        pv = jax.lax.dot_general(p.astype(jnp.bfloat16), v_c,            # P @ V^T
                                 (((1,), (1,)), ((), ())),
                                 preferred_element_type=jnp.float32)     # (tq, C)
        acc_s[...] = alpha * acc_s[...] + pv
        m_s[...] = m_new
        return carry

    jax.lax.fori_loop(0, num_kv, kv_step, 0)

    # Finalize once per q tile: exact division (off the hot loop), out-proj,
    # residual add in channel-major layout (lane-dense store).
    attn = acc_s[...] / l_s[...]                                         # (tq, C)
    out_c = jax.lax.dot_general(w_out_ref[...], attn.astype(jnp.bfloat16),
                                (((1,), (1,)), ((), ())),                # W @ attn^T
                                preferred_element_type=jnp.float32)      # (C, tq)
    out_c = out_c + b_out_ref[...]
    o_ref[0] = (x_ref[0].astype(jnp.float32) + out_c).astype(o_ref.dtype)


# ---------------------------------------------------------------------------
# Wrapper
# ---------------------------------------------------------------------------
def vae_attention_block(x, params, *, num_groups=NUM_GROUPS, tile=256):
    """x: (B, C, H, W), C % 32 == 0. Returns (B, C, H, W)."""
    b, c, h, w = x.shape
    assert c % num_groups == 0
    gs = c // num_groups
    hw = h * w
    x_bytes = jnp.dtype(x.dtype).itemsize

    # Attention tile: lane-dense (multiple of 128) and divides the padded HW.
    t = min(_round_up(tile, 128), _round_up(hw, 128))
    hw_pad = _round_up(hw, t)                 # padding < t => no fully-padded KV tile
    n_t = hw_pad // t

    # Larger tile for the purely mem-bound stats / projection passes: largest
    # multiple of t that divides hw_pad with an f32 x-block of <= ~2 MiB.
    d_max = max(1, (2 * 1024 * 1024) // max(1, c * t * 4))
    d = 1
    for cand in range(1, n_t + 1):
        if n_t % cand == 0 and cand <= d_max:
            d = cand
    t_big = d * t
    n_big = hw_pad // t_big

    x_flat = x.reshape(b, c, hw)
    if hw_pad != hw:
        x_flat = jnp.pad(x_flat, ((0, 0), (0, 0), (0, hw_pad - hw)))

    # ---- pass 1: per-channel sum / sumsq over HW ------------------------------
    need1 = 2 * c * t_big * x_bytes + 2 * 2 * c * 128 * 4
    sum_p, sq_p = pl.pallas_call(
        functools.partial(_gn_stats_kernel, n_chunks=t_big // 128),
        out_shape=(jax.ShapeDtypeStruct((b, c, 128), jnp.float32),
                   jax.ShapeDtypeStruct((b, c, 128), jnp.float32)),
        grid=(b, n_big),
        in_specs=[pl.BlockSpec((1, c, t_big), lambda bb, hh: (bb, 0, hh))],
        out_specs=(pl.BlockSpec((1, c, 128), lambda bb, hh: (bb, 0, 0)),
                   pl.BlockSpec((1, c, 128), lambda bb, hh: (bb, 0, 0))),
        compiler_params=pltpu.CompilerParams(
            dimension_semantics=("parallel", "arbitrary"),
            vmem_limit_bytes=_vmem_limit(need1)),
    )(x_flat)

    # ---- tiny O(B*C) lane-reduce + group fold + gamma/beta fold (plain JAX) ---
    sum_c = jnp.sum(sum_p, axis=-1)                         # (B, C)
    sq_c = jnp.sum(sq_p, axis=-1)                           # (B, C)
    inv_n = 1.0 / float(gs * hw)
    gsum = sum_c.reshape(b, num_groups, gs).sum(-1, keepdims=True)
    gsq = sq_c.reshape(b, num_groups, gs).sum(-1, keepdims=True)
    mean_g = gsum * inv_n
    var_g = gsq * inv_n - mean_g * mean_g
    rstd_g = jax.lax.rsqrt(var_g + EPS)
    mean_ch = jnp.broadcast_to(mean_g, (b, num_groups, gs)).reshape(b, c)
    rstd_ch = jnp.broadcast_to(rstd_g, (b, num_groups, gs)).reshape(b, c)
    gamma = params["gamma"].astype(jnp.float32)
    beta = params["beta"].astype(jnp.float32)
    scale = (gamma[None, :] * rstd_ch).reshape(b, c, 1)
    bias = (beta[None, :] - mean_ch * gamma[None, :] * rstd_ch).reshape(b, c, 1)

    # ---- weight prep: fold 1/sqrt(C) into the Q rows of W_in / b_in -----------
    inv_sqrt_d = 1.0 / float(c) ** 0.5
    qscale = jnp.concatenate([jnp.full((c,), inv_sqrt_d, jnp.float32),
                              jnp.ones((2 * c,), jnp.float32)])
    w_in = (params["w_in"].astype(jnp.float32) * qscale[:, None]).astype(jnp.bfloat16)
    b_in = (params["b_in"].astype(jnp.float32) * qscale).reshape(3 * c, 1)
    w_out = params["w_out"].astype(jnp.bfloat16)
    b_out = params["b_out"].reshape(c, 1).astype(jnp.float32)

    # ---- pass 2: normalize + QKV projection -> bf16 (B, 3C, HWp) --------------
    need2 = (2 * c * t_big * x_bytes            # x tiles (double-buffered)
             + 2 * 3 * c * t_big * 2            # qkv out tiles
             + 2 * (3 * c * c * 2 + 3 * c * 4)  # w_in + b_in
             + 2 * (2 * c * 4))                 # scale + bias
    qkv = pl.pallas_call(
        _gn_qkv_kernel,
        out_shape=jax.ShapeDtypeStruct((b, 3 * c, hw_pad), jnp.bfloat16),
        grid=(b, n_big),
        in_specs=[
            pl.BlockSpec((1, c, t_big), lambda bb, hh: (bb, 0, hh)),    # x
            pl.BlockSpec((1, c, 1), lambda bb, hh: (bb, 0, 0)),         # GN scale
            pl.BlockSpec((1, c, 1), lambda bb, hh: (bb, 0, 0)),         # GN bias
            pl.BlockSpec((3 * c, c), lambda bb, hh: (0, 0)),            # w_in
            pl.BlockSpec((3 * c, 1), lambda bb, hh: (0, 0)),            # b_in
        ],
        out_specs=pl.BlockSpec((1, 3 * c, t_big), lambda bb, hh: (bb, 0, hh)),
        compiler_params=pltpu.CompilerParams(
            dimension_semantics=("parallel", "parallel"),
            vmem_limit_bytes=_vmem_limit(need2)),
    )(x_flat, scale, bias, w_in, b_in)

    # ---- pass 3: flash attention (resident K/V) + out proj + residual ---------
    need3 = (2 * 2 * c * hw_pad * 2             # K + V resident (double-buffered)
             + 2 * c * t * (2 + 2 * x_bytes)    # Q + x(residual) + out tiles
             + 2 * (c * c * 2 + c * 4)          # w_out + b_out
             + t * c * 4 + 2 * t * 4            # acc + m + l scratch
             + 2 * t * t * 4)                   # s / p intermediates
    kernel = functools.partial(_attn_kernel, tile_kv=t, num_kv=n_t,
                               hw_real=hw, needs_mask=(hw_pad != hw))

    out_flat = pl.pallas_call(
        kernel,
        out_shape=jax.ShapeDtypeStruct((b, c, hw_pad), x.dtype),
        grid=(b, n_t),
        in_specs=[
            pl.BlockSpec((1, c, t), lambda bb, qi: (bb, 0, qi)),        # x (residual)
            pl.BlockSpec((1, c, t), lambda bb, qi: (bb, 0, qi)),        # Q tile
            pl.BlockSpec((1, c, hw_pad), lambda bb, qi: (bb, 1, 0)),    # K (resident/batch)
            pl.BlockSpec((1, c, hw_pad), lambda bb, qi: (bb, 2, 0)),    # V (resident/batch)
            pl.BlockSpec((c, c), lambda bb, qi: (0, 0)),                # w_out
            pl.BlockSpec((c, 1), lambda bb, qi: (0, 0)),                # b_out
        ],
        out_specs=pl.BlockSpec((1, c, t), lambda bb, qi: (bb, 0, qi)),
        scratch_shapes=[
            pltpu.VMEM((t, 1), jnp.float32),      # running max m
            pltpu.VMEM((t, 1), jnp.float32),      # running denom l
            pltpu.VMEM((t, c), jnp.float32),      # output accumulator
        ],
        compiler_params=pltpu.CompilerParams(
            dimension_semantics=("parallel", "parallel"),
            vmem_limit_bytes=_vmem_limit(need3)),
    )(x_flat, qkv, qkv, qkv, w_out, b_out)

    if hw_pad != hw:
        out_flat = out_flat[:, :, :hw]
    return out_flat.reshape(b, c, h, w)


# ---------------------------------------------------------------------------
# Pure-JAX reference mirroring the PyTorch module.
# ---------------------------------------------------------------------------
def vae_attention_block_ref(x, params, *, num_groups=NUM_GROUPS):
    b, c, h, w = x.shape
    xg = x.reshape(b, num_groups, (c // num_groups) * h * w).astype(jnp.float32)
    mean = xg.mean(-1, keepdims=True)
    var = ((xg - mean) ** 2).mean(-1, keepdims=True)
    xn = (xg - mean) / jnp.sqrt(var + EPS)
    xn = xn.reshape(b, c, h * w)
    xn = xn * params["gamma"][None, :, None] + params["beta"][None, :, None]

    xt = xn.transpose(0, 2, 1)                                 # (B, HW, C)
    qkv = xt @ params["w_in"].T + params["b_in"]
    q, k, v = jnp.split(qkv, 3, axis=-1)
    s = (q @ k.transpose(0, 2, 1)) / jnp.sqrt(jnp.float32(c))
    p = jax.nn.softmax(s, axis=-1)
    o = p @ v
    o = o @ params["w_out"].T + params["b_out"]
    o = o.transpose(0, 2, 1).reshape(b, c, h, w)
    return x + o


def init_params(key, channels):
    k0, k1, k2, k3, k4, k5 = jax.random.split(key, 6)
    scale = 0.05
    return {
        "gamma": 1.0 + scale * jax.random.normal(k0, (channels,), jnp.float32),
        "beta": scale * jax.random.normal(k1, (channels,), jnp.float32),
        "w_in": scale * jax.random.normal(k2, (3 * channels, channels), jnp.float32),
        "b_in": scale * jax.random.normal(k3, (3 * channels,), jnp.float32),
        "w_out": scale * jax.random.normal(k4, (channels, channels), jnp.float32),
        "b_out": scale * jax.random.normal(k5, (channels,), jnp.float32),
    }


if __name__ == "__main__":
    # GroupNorm(32, C) requires C % 32 == 0.  HW = 256 with tile=128 exercises
    # 2 query tiles and a 2-iteration in-kernel KV loop across 2 batches.
    B, C, H, W = 2, 64, 16, 16
    key = jax.random.PRNGKey(0)
    kx, kp = jax.random.split(key)
    x = jax.random.normal(kx, (B, C, H, W), jnp.float32)
    params = init_params(kp, C)

    out = jax.block_until_ready(vae_attention_block(x, params, tile=128))
    ref = vae_attention_block_ref(x, params)
    assert out.shape == (B, C, H, W)
    err = float(jnp.max(jnp.abs(out - ref)))
    # bf16 MXU operands -> slightly looser tolerance vs the f32 reference.
    assert jnp.allclose(out, ref, atol=1e-2, rtol=1e-2), err

    # Non-128-multiple spatial size: exercises HW padding + KV masking path.
    x2 = jax.random.normal(kx, (1, C, 12, 12), jnp.float32)
    out2 = jax.block_until_ready(vae_attention_block(x2, params, tile=128))
    ref2 = vae_attention_block_ref(x2, params)
    err2 = float(jnp.max(jnp.abs(out2 - ref2)))
    assert jnp.allclose(out2, ref2, atol=1e-2, rtol=1e-2), err2

    print("KERNEL_OK")
</pallas_src>

<mosaic_0001>
module attributes {stable_mosaic.version = 11 : i64} {
  func.func @_gn_stats_kernel(%arg0: i32, %arg1: i32, %arg2: memref<1x64x256xf32, #tpu.memory_space<vmem>>, %arg3: memref<1x64x128xf32, #tpu.memory_space<vmem>>, %arg4: memref<1x64x128xf32, #tpu.memory_space<vmem>>) attributes {dimension_semantics = [#tpu.dimension_semantics<parallel>, #tpu.dimension_semantics<arbitrary>], iteration_bounds = array<i64: 2, 1>, scalar_prefetch = 0 : i64, scratch_operands = 0 : i64, tpu.core_type = #tpu.core_type<tc>, window_params = [{transform_indices = @transform_0, window_bounds = array<i64: 1, 64, 256>}, {transform_indices = @transform_1, window_bounds = array<i64: 1, 64, 128>}, {transform_indices = @transform_2, window_bounds = array<i64: 1, 64, 128>}]} {
    %c0_i32 = arith.constant 0 : i32
    %0 = arith.cmpi eq, %arg1, %c0_i32 : i32
    %1 = arith.extui %0 : i1 to i32
    %c0_i32_0 = arith.constant 0 : i32
    %2 = arith.cmpi ne, %1, %c0_i32_0 : i32
    scf.if %2 {
      %cst = arith.constant 0.000000e+00 : f32
      %23 = vector.broadcast %cst : f32 to vector<1x64x128xf32>
      %c0_15 = arith.constant 0 : index
      %c0_16 = arith.constant 0 : index
      %c0_17 = arith.constant 0 : index
      %24 = vector.load %arg3[%c0_15, %c0_16, %c0_17] : memref<1x64x128xf32, #tpu.memory_space<vmem>>, vector<1x64x128xf32>
      tpu.vector_store %arg3[%c0_15, %c0_16, %c0_17], %23 {strides = array<i32>} : memref<1x64x128xf32, #tpu.memory_space<vmem>>, vector<1x64x128xf32>,
      %cst_18 = arith.constant 0.000000e+00 : f32
      %25 = vector.broadcast %cst_18 : f32 to vector<1x64x128xf32>
      %c0_19 = arith.constant 0 : index
      %c0_20 = arith.constant 0 : index
      %c0_21 = arith.constant 0 : index
      %26 = vector.load %arg4[%c0_19, %c0_20, %c0_21] : memref<1x64x128xf32, #tpu.memory_space<vmem>>, vector<1x64x128xf32>
      tpu.vector_store %arg4[%c0_19, %c0_20, %c0_21], %25 {strides = array<i32>} : memref<1x64x128xf32, #tpu.memory_space<vmem>>, vector<1x64x128xf32>,
    } else {
    }
    %c0 = arith.constant 0 : index
    %c0_1 = arith.constant 0 : index
    %c0_2 = arith.constant 0 : index
    %3 = vector.load %arg2[%c0, %c0_1, %c0_2] : memref<1x64x256xf32, #tpu.memory_space<vmem>>, vector<1x64x256xf32>
    %4 = vector.shape_cast %3 : vector<1x64x256xf32> to vector<64x256xf32>
    %c0_3 = arith.constant 0 : index
    %c0_4 = arith.constant 0 : index
    %c0_5 = arith.constant 0 : index
    %5 = vector.load %arg3[%c0_3, %c0_4, %c0_5] : memref<1x64x128xf32, #tpu.memory_space<vmem>>, vector<1x64x128xf32>
    %6 = vector.shape_cast %5 : vector<1x64x128xf32> to vector<64x128xf32>
    %c0_6 = arith.constant 0 : index
    %c0_7 = arith.constant 0 : index
    %c0_8 = arith.constant 0 : index
    %7 = vector.load %arg4[%c0_6, %c0_7, %c0_8] : memref<1x64x128xf32, #tpu.memory_space<vmem>>, vector<1x64x128xf32>
    %8 = vector.shape_cast %7 : vector<1x64x128xf32> to vector<64x128xf32>
    %9 = vector.extract_strided_slice %4 {offsets = [0, 0], sizes = [64, 128], strides = [1, 1]} : vector<64x256xf32> to vector<64x128xf32>
    %10 = arith.addf %6, %9 : vector<64x128xf32>
    %11 = arith.mulf %9, %9 : vector<64x128xf32>
    %12 = arith.addf %8, %11 : vector<64x128xf32>
    %13 = vector.extract_strided_slice %4 {offsets = [0, 128], sizes = [64, 128], strides = [1, 1]} : vector<64x256xf32> to vector<64x128xf32>
    %14 = arith.addf %10, %13 : vector<64x128xf32>
    %15 = arith.mulf %13, %13 : vector<64x128xf32>
    %16 = arith.addf %12, %15 : vector<64x128xf32>
    %c0_9 = arith.constant 0 : index
    %c0_10 = arith.constant 0 : index
    %c0_11 = arith.constant 0 : index
    %17 = vector.load %arg3[%c0_9, %c0_10, %c0_11] : memref<1x64x128xf32, #tpu.memory_space<vmem>>, vector<1x64x128xf32>
    %18 = vector.shape_cast %17 : vector<1x64x128xf32> to vector<64x128xf32>
    %19 = vector.shape_cast %14 : vector<64x128xf32> to vector<1x64x128xf32>
    tpu.vector_store %arg3[%c0_9, %c0_10, %c0_11], %19 {strides = array<i32>} : memref<1x64x128xf32, #tpu.memory_space<vmem>>, vector<1x64x128xf32>,
    %c0_12 = arith.constant 0 : index
    %c0_13 = arith.constant 0 : index
    %c0_14 = arith.constant 0 : index
    %20 = vector.load %arg4[%c0_12, %c0_13, %c0_14] : memref<1x64x128xf32, #tpu.memory_space<vmem>>, vector<1x64x128xf32>
    %21 = vector.shape_cast %20 : vector<1x64x128xf32> to vector<64x128xf32>
    %22 = vector.shape_cast %16 : vector<64x128xf32> to vector<1x64x128xf32>
    tpu.vector_store %arg4[%c0_12, %c0_13, %c0_14], %22 {strides = array<i32>} : memref<1x64x128xf32, #tpu.memory_space<vmem>>, vector<1x64x128xf32>,
    return
  }
  func.func @transform_0(%arg0: i32, %arg1: i32) -> (i32, i32, i32) {
    %c0_i32 = arith.constant 0 : i32
    %c0_i32_0 = arith.constant 0 : i32
    return %arg0, %c0_i32, %arg1 : i32, i32, i32
  }
  func.func @transform_1(%arg0: i32, %arg1: i32) -> (i32, i32, i32) {
    %c0_i32 = arith.constant 0 : i32
    %c0_i32_0 = arith.constant 0 : i32
    %c0_i32_1 = arith.constant 0 : i32
    return %arg0, %c0_i32, %c0_i32_0 : i32, i32, i32
  }
  func.func @transform_2(%arg0: i32, %arg1: i32) -> (i32, i32, i32) {
    %c0_i32 = arith.constant 0 : i32
    %c0_i32_0 = arith.constant 0 : i32
    %c0_i32_1 = arith.constant 0 : i32
    return %arg0, %c0_i32, %c0_i32_0 : i32, i32, i32
  }
}

</mosaic_0001>

<llo_original>
// kernel: tpu_custom_call.1
$region0: #{tpu_custom_call.1}
  #allocation0 [shape = 'u32[]', space=smem, size = 0x4, offset = 0x4, fixed_abs, tag = 'smem constant byte address 0x4 - core index']
  #allocation1 [shape = 'u32[72,128]{1,0:T(1,128)}', space=vmem, size = 0x9000, scoped, tag = 'internal scratch']
  %s0 = inlined_call_operand.hbm [shape: f32[2,64,256], index: 0, kind: input, shape index: {}]
  %s1 = inlined_call_operand.hbm [shape: f32[2,64,128], index: 1, kind: output, shape index: {0}]
  %s2 = inlined_call_operand.hbm [shape: f32[2,64,128], index: 2, kind: output, shape index: {1}]
  %3 = xla_tuple %s1, %s2
  %s4 = sld [smem:[#allocation0]]
  $region53: #{tpu_custom_call.1} parent=0
    _
  %s6 = ssub.s32 1, %s4
  %s7 = scalar_select 0, %s6, %s4
  $region1: #{tpu_custom_call.1} parent=0
    #allocation2 [shape = 'u8[131072]{0}', space=vmem, size = 0x20000, scoped, tag = 'input window, operand 0']
    #allocation3 [shape = 's32[2]{0}', space=sflag, size = 0x8, scoped, tag = 'scoped memory for tpu_custom_call.1']
    #allocation4 [shape = 's32[2]{0}', space=sflag, size = 0x8, scoped, tag = 'scoped memory for tpu_custom_call.1']
    #allocation5 [shape = 'u8[65536]{0}', space=vmem, size = 0x10000, scoped, tag = 'output window, operand 0']
    #allocation6 [shape = 'u8[65536]{0}', space=vmem, size = 0x10000, scoped, tag = 'output window, operand 1']
    #allocation7 [shape = 's32[2]{0}', space=sflag, size = 0x8, scoped, tag = 'scoped memory for tpu_custom_call.1']
    %8 = vsyncpa [#allocation3], 0
    %s9 = scalar_lea.sflag [#allocation3], 1
    %10 = vsyncpa %s9, 0
    %11 = vsyncpa [#allocation4], 0
    %s12 = scalar_lea.sflag [#allocation4], 1
    %13 = vsyncpa %s12, 0
    %14 = vsyncpa [#allocation7], 0
    %s15 = scalar_lea.sflag [#allocation7], 1
    %16 = vsyncpa %s15, 0
    loop: start=0, step=1, limit=4
    $region2: #{tpu_custom_call.1} parent=1 // loop_pre_header
      _
    $region3: #{tpu_custom_call.1} parent=1 // loop_header
      %s18 = sphi 0, %s22
      %p19 = scmp.ge.s32.totalorder %s18, 4
      %s25 = sphi 0, %s37
      %s26 = sphi 0, %s33
      %s27 = sphi 0, %s25
      %s28 = sphi 0, %s26
      %s29 = sphi 0, %s27
      %s30 = sphi 0, %s28
      %s42 = sphi 0, %s44
      %s45 = sphi 0, %s42
      %s46 = sphi 0, %s45
      %s62 = sphi 0, %s46
      %s68 = sphi 0, %s70
      %s71 = sphi 0, %s68
      %s72 = sphi 0, %s71
      %s88 = sphi 0, %s72
      %s94 = sphi 0, %s96
      %s97 = sphi 0, %s94
      %s98 = sphi 0, %s97
      %s114 = sphi 0, %s98
    $region4: #{tpu_custom_call.1} parent=1 // loop_header_branch
      %21 = sbr.rel (%p19) target = $region8
    $region5: #{tpu_custom_call.1} parent=1 // loop_body
      %s23 = ssub.s32 %s18, 1
      %s24 = ssub.s32 %s18, 2
      %s31 = sadd.s32 1, %s26
      %p32 = scmp.ge.s32.totalorder %s31, 1
      %s33 = scalar_select %p32, 0, %s31
      %s34 = sadd.s32 1, %s25
      %s35 = scalar_select %p32, %s34, %s25
      %p36 = scmp.ge.s32.totalorder %s35, 2
      %s37 = scalar_select %p36, 0, %s35
      %s38 = ssub.s32 %s25, %s37
      %s39 = ssub.s32 %s26, %s33
      %s40 = sor.u32 %s38, %s39
      %p41 = scmp.eq.s32.totalorder %s40, 0
      %s43 = sadd.s32 %s42, 1
      %s44 = scalar_select %p41, %s42, %s43
      %p47 = pneg %p41
      %p48 = scmp.eq.s32.totalorder %s18, 1
      %p49 = por %p47, %p48
      %p50 = scmp.ne.s32.totalorder %s42, %s45
      %p51 = scmp.eq.s32.totalorder %s18, 0
      %p52 = por %p50, %p51
      %p53 = scmp.ne.s32.totalorder %s42, %s45
      %p54 = scmp.eq.s32.totalorder %s23, 1
      %p55 = por %p53, %p54
      %p56 = scmp.ne.s32.totalorder %s45, %s46
      %p57 = scmp.eq.s32.totalorder %s23, 0
      %p58 = por %p56, %p57
      %p59 = scmp.ne.s32.totalorder %s45, %s46
      %p60 = scmp.eq.s32.totalorder %s24, 1
      %p61 = por %p59, %p60
      %p63 = scmp.ne.s32.totalorder %s46, %s62
      %p64 = scmp.eq.s32.totalorder %s24, 0
      %p65 = por %p63, %p64
      %s66 = ssub.s32 %s25, %s37
      %p67 = scmp.eq.s32.totalorder %s66, 0
      %s69 = sadd.s32 %s68, 1
      %s70 = scalar_select %p67, %s68, %s69
      %p73 = pneg %p67
      %p74 = scmp.eq.s32.totalorder %s18, 1
      %p75 = por %p73, %p74
      %p76 = scmp.ne.s32.totalorder %s68, %s71
      %p77 = scmp.eq.s32.totalorder %s18, 0
      %p78 = por %p76, %p77
      %p79 = scmp.ne.s32.totalorder %s68, %s71
      %p80 = scmp.eq.s32.totalorder %s23, 1
      %p81 = por %p79, %p80
      %p82 = scmp.ne.s32.totalorder %s71, %s72
      %p83 = scmp.eq.s32.totalorder %s23, 0
      %p84 = por %p82, %p83
      %p85 = scmp.ne.s32.totalorder %s71, %s72
      %p86 = scmp.eq.s32.totalorder %s24, 1
      %p87 = por %p85, %p86
      %p89 = scmp.ne.s32.totalorder %s72, %s88
      %p90 = scmp.eq.s32.totalorder %s24, 0
      %p91 = por %p89, %p90
      %s92 = ssub.s32 %s25, %s37
      %p93 = scmp.eq.s32.totalorder %s92, 0
      %s95 = sadd.s32 %s94, 1
      %s96 = scalar_select %p93, %s94, %s95
      %p99 = pneg %p93
      %p100 = scmp.eq.s32.totalorder %s18, 1
      %p101 = por %p99, %p100
      %p102 = scmp.ne.s32.totalorder %s94, %s97
      %p103 = scmp.eq.s32.totalorder %s18, 0
      %p104 = por %p102, %p103
      %p105 = scmp.ne.s32.totalorder %s94, %s97
      %p106 = scmp.eq.s32.totalorder %s23, 1
      %p107 = por %p105, %p106
      %p108 = scmp.ne.s32.totalorder %s97, %s98
      %p109 = scmp.eq.s32.totalorder %s23, 0
      %p110 = por %p108, %p109
      %p111 = scmp.ne.s32.totalorder %s97, %s98
      %p112 = scmp.eq.s32.totalorder %s24, 1
      %p113 = por %p111, %p112
      %p115 = scmp.ne.s32.totalorder %s98, %s114
      %p116 = scmp.eq.s32.totalorder %s24, 0
      %p117 = por %p115, %p116
      %p118 = scmp.le.s32.totalorder 1, %s18
      %p119 = scmp.lt.s32.totalorder %s18, 3
      %p120 = pnand %p118, %p119
      %p121 = pneg %p120
      // Predicated region
      $region9: #{tpu_custom_call.1} parent=5 // pred_check
        _
      $region10: #{tpu_custom_call.1} parent=5 // pred_check_branch
        %123 = sbr.rel (%p120) target = $region12
      $region11: #{tpu_custom_call.1} parent=5 // pred_region
        %s124 = ssub.s32 %s18, 1
      $region12: #{tpu_custom_call.1} parent=5 // pred_fallthru
        _
      %p125 = scmp.lt.s32.totalorder %s18, 2
      // Predicated region
      $region13: #{tpu_custom_call.1} parent=5 // pred_check
        %p126 = pneg %p125
      $region14: #{tpu_custom_call.1} parent=5 // pred_check_branch
        %128 = sbr.rel (%p126) target = $region16
      $region15: #{tpu_custom_call.1} parent=5 // pred_region
        // Predicated region
        $region17: #{tpu_custom_call.1} parent=15 // pred_check
          %p129 = pneg %p52
        $region18: #{tpu_custom_call.1} parent=15 // pred_check_branch
          %131 = sbr.rel (%p129) target = $region20
        $region19: #{tpu_custom_call.1} parent=15 // pred_region
          %s132 = sand.u32 %s42, 1
          %s133 = scalar_lea.sflag [#allocation3], %s132
          %s134 = sand.u32 %s42, 1
          %s135 = smul.addr %s134, 128
          %s136 = scalar_lea.vmem [#allocation2], %s135
          %s137 = smul.u32 2, %s26
          %139 = vsyncadd %s133, 0
          %s140 = smul.addr %s25, 16
          %s141 = sadd.s32 %s137, %s140
          %s142 = smul.addr %s141, 8
          %s143 = scalar_lea.hbm %s0, %s142
          %s144 = sshll.u32 %s143, 4
          %s145 = int_to_ptr.hbm [resolvable:$true] %s144
          %s146 = sshll.u32 %s136, 4
          %s147 = int_to_ptr.vmem [resolvable:$true] %s146
          %152 = dma.hbm_to_vmem [thread:$0]  %s145, 2048, %s147, %s133, 256, 256, 16
        $region20: #{tpu_custom_call.1} parent=15 // pred_fallthru
          _
      $region16: #{tpu_custom_call.1} parent=5 // pred_fallthru
        _
      %p153 = scmp.le.s32.totalorder 1, %s18
      %p154 = scmp.lt.s32.totalorder %s18, 3
      %p155 = pnand %p153, %p154
      %p156 = pneg %p155
      // Predicated region
      $region21: #{tpu_custom_call.1} parent=5 // pred_check
        _
      $region22: #{tpu_custom_call.1} parent=5 // pred_check_branch
        %158 = sbr.rel (%p155) target = $region24
      $region23: #{tpu_custom_call.1} parent=5 // pred_region
        %s159 = ssub.s32 %s18, 1
        %s160 = sand.u32 %s45, 1
        %s161 = scalar_lea.sflag [#allocation3], %s160
        %s162 = sand.u32 %s45, 1
        %s163 = smul.addr %s162, 128
        %s164 = scalar_lea.vmem [#allocation2], %s163
        // Predicated region
        $region25: #{tpu_custom_call.1} parent=23 // pred_check
          %p165 = pneg %p58
        $region26: #{tpu_custom_call.1} parent=23 // pred_check_branch
          %167 = sbr.rel (%p165) target = $region28
        $region27: #{tpu_custom_call.1} parent=23 // pred_region
          %169 = dma.done %s161, 2048
        $region28: #{tpu_custom_call.1} parent=23 // pred_fallthru
          _
        %s170 = sand.u32 %s45, 1
        %s171 = scalar_lea.sflag [#allocation3], %s170
        %s172 = sand.u32 %s45, 1
        %s173 = smul.addr %s172, 128
        %s174 = scalar_lea.vmem [#allocation2], %s173
        %p175 = pneg %p58
        %p176 = pneg %p55
        %p177 = pneg %p84
        %p178 = pneg %p81
        %s179 = sand.u32 %s71, 1
        %s180 = scalar_lea.sflag [#allocation4], %s179
        %s181 = sand.u32 %s71, 1
        %s182 = smul.addr %s181, 64
        %s183 = scalar_lea.vmem [#allocation5], %s182
        %p184 = pneg %p110
        %p185 = pneg %p107
        %s186 = sand.u32 %s97, 1
        %s187 = scalar_lea.sflag [#allocation7], %s186
        %s188 = sand.u32 %s97, 1
        %s189 = smul.addr %s188, 64
        %s190 = scalar_lea.vmem [#allocation6], %s189
        %s191 = smul.u32 2, %s28
        %p192 = scmp.eq.s32.totalorder %s28, 0
        // Predicated region
        $region29: #{tpu_custom_call.1} parent=23 // pred_check
          %p193 = pneg %p192
        $region30: #{tpu_custom_call.1} parent=23 // pred_check_branch
          %195 = sbr.rel (%p193) target = $region32
        $region31: #{tpu_custom_call.1} parent=23 // pred_region
          %196 = vst [vmem:[%s183] sm:$0xff] 0.0
          %197 = vst [vmem:[%s183 + $0x8] sm:$0xff] 0.0
          %198 = vst [vmem:[%s183 + $0x10] sm:$0xff] 0.0
          %199 = vst [vmem:[%s183 + $0x18] sm:$0xff] 0.0
          %200 = vst [vmem:[%s183 + $0x20] sm:$0xff] 0.0
          %201 = vst [vmem:[%s183 + $0x28] sm:$0xff] 0.0
          %202 = vst [vmem:[%s183 + $0x30] sm:$0xff] 0.0
          %203 = vst [vmem:[%s183 + $0x38] sm:$0xff] 0.0
          %204 = vst [vmem:[%s190] sm:$0xff] 0.0
          %205 = vst [vmem:[%s190 + $0x8] sm:$0xff] 0.0
          %206 = vst [vmem:[%s190 + $0x10] sm:$0xff] 0.0
          %207 = vst [vmem:[%s190 + $0x18] sm:$0xff] 0.0
          %208 = vst [vmem:[%s190 + $0x20] sm:$0xff] 0.0
          %209 = vst [vmem:[%s190 + $0x28] sm:$0xff] 0.0
          %210 = vst [vmem:[%s190 + $0x30] sm:$0xff] 0.0
          %211 = vst [vmem:[%s190 + $0x38] sm:$0xff] 0.0
        $region32: #{tpu_custom_call.1} parent=23 // pred_fallthru
          _
        %v212 = vld [vmem:[%s164] sm:$0xff]
        %v213 = vld [vmem:[%s164 + $0x8] sm:$0xff]
        %v214 = vld [vmem:[%s164 + $0x10] sm:$0xff]
        %v215 = vld [vmem:[%s164 + $0x18] sm:$0xff]
        %v216 = vld [vmem:[%s164 + $0x20] sm:$0xff]
        %v217 = vld [vmem:[%s164 + $0x28] sm:$0xff]
        %v218 = vld [vmem:[%s164 + $0x30] sm:$0xff]
        %v219 = vld [vmem:[%s164 + $0x38] sm:$0xff]
        %v220 = vld [vmem:[%s164 + $0x40] sm:$0xff]
        %v221 = vld [vmem:[%s164 + $0x48] sm:$0xff]
        %v222 = vld [vmem:[%s164 + $0x50] sm:$0xff]
        %v223 = vld [vmem:[%s164 + $0x58] sm:$0xff]
        %v224 = vld [vmem:[%s164 + $0x60] sm:$0xff]
        %v225 = vld [vmem:[%s164 + $0x68] sm:$0xff]
        %v226 = vld [vmem:[%s164 + $0x70] sm:$0xff]
        %v227 = vld [vmem:[%s164 + $0x78] sm:$0xff]
        %v228 = vld [vmem:[%s183] sm:$0xff]
        %v229 = vld [vmem:[%s183 + $0x8] sm:$0xff]
        %v230 = vld [vmem:[%s183 + $0x10] sm:$0xff]
        %v231 = vld [vmem:[%s183 + $0x18] sm:$0xff]
        %v232 = vld [vmem:[%s183 + $0x20] sm:$0xff]
        %v233 = vld [vmem:[%s183 + $0x28] sm:$0xff]
        %v234 = vld [vmem:[%s183 + $0x30] sm:$0xff]
        %v235 = vld [vmem:[%s183 + $0x38] sm:$0xff]
        %v236 = vld [vmem:[%s190] sm:$0xff]
        %v237 = vld [vmem:[%s190 + $0x8] sm:$0xff]
        %v238 = vld [vmem:[%s190 + $0x10] sm:$0xff]
        %v239 = vld [vmem:[%s190 + $0x18] sm:$0xff]
        %v240 = vld [vmem:[%s190 + $0x20] sm:$0xff]
        %v241 = vld [vmem:[%s190 + $0x28] sm:$0xff]
        %v242 = vld [vmem:[%s190 + $0x30] sm:$0xff]
        %v243 = vld [vmem:[%s190 + $0x38] sm:$0xff]
        %v244 = vadd.f32 %v228, %v212
        %v245 = vadd.f32 %v229, %v214
        %v246 = vadd.f32 %v230, %v216
        %v247 = vadd.f32 %v231, %v218
        %v248 = vadd.f32 %v232, %v220
        %v249 = vadd.f32 %v233, %v222
        %v250 = vadd.f32 %v234, %v224
        %v251 = vadd.f32 %v235, %v226
        %v252 = vmul.f32 %v212, %v212
        %v253 = vmul.f32 %v214, %v214
        %v254 = vmul.f32 %v216, %v216
        %v255 = vmul.f32 %v218, %v218
        %v256 = vmul.f32 %v220, %v220
        %v257 = vmul.f32 %v222, %v222
        %v258 = vmul.f32 %v224, %v224
        %v259 = vmul.f32 %v226, %v226
        %v260 = vadd.f32 %v236, %v252
        %v261 = vadd.f32 %v237, %v253
        %v262 = vadd.f32 %v238, %v254
        %v263 = vadd.f32 %v239, %v255
        %v264 = vadd.f32 %v240, %v256
        %v265 = vadd.f32 %v241, %v257
        %v266 = vadd.f32 %v242, %v258
        %v267 = vadd.f32 %v243, %v259
        %v268 = vadd.f32 %v244, %v213
        %v269 = vadd.f32 %v245, %v215
        %v270 = vadd.f32 %v246, %v217
        %v271 = vadd.f32 %v247, %v219
        %v272 = vadd.f32 %v248, %v221
        %v273 = vadd.f32 %v249, %v223
        %v274 = vadd.f32 %v250, %v225
        %v275 = vadd.f32 %v251, %v227
        %v276 = vmul.f32 %v213, %v213
        %v277 = vmul.f32 %v215, %v215
        %v278 = vmul.f32 %v217, %v217
        %v279 = vmul.f32 %v219, %v219
        %v280 = vmul.f32 %v221, %v221
        %v281 = vmul.f32 %v223, %v223
        %v282 = vmul.f32 %v225, %v225
        %v283 = vmul.f32 %v227, %v227
        %v284 = vadd.f32 %v260, %v276
        %v285 = vadd.f32 %v261, %v277
        %v286 = vadd.f32 %v262, %v278
        %v287 = vadd.f32 %v263, %v279
        %v288 = vadd.f32 %v264, %v280
        %v289 = vadd.f32 %v265, %v281
        %v290 = vadd.f32 %v266, %v282
        %v291 = vadd.f32 %v267, %v283
        %292 = vst [vmem:[%s183] sm:$0xff] %v268
        %293 = vst [vmem:[%s183 + $0x8] sm:$0xff] %v269
        %294 = vst [vmem:[%s183 + $0x10] sm:$0xff] %v270
        %295 = vst [vmem:[%s183 + $0x18] sm:$0xff] %v271
        %296 = vst [vmem:[%s183 + $0x20] sm:$0xff] %v272
        %297 = vst [vmem:[%s183 + $0x28] sm:$0xff] %v273
        %298 = vst [vmem:[%s183 + $0x30] sm:$0xff] %v274
        %299 = vst [vmem:[%s183 + $0x38] sm:$0xff] %v275
        %300 = vst [vmem:[%s190] sm:$0xff] %v284
        %301 = vst [vmem:[%s190 + $0x8] sm:$0xff] %v285
        %302 = vst [vmem:[%s190 + $0x10] sm:$0xff] %v286
        %303 = vst [vmem:[%s190 + $0x18] sm:$0xff] %v287
        %304 = vst [vmem:[%s190 + $0x20] sm:$0xff] %v288
        %305 = vst [vmem:[%s190 + $0x28] sm:$0xff] %v289
        %306 = vst [vmem:[%s190 + $0x30] sm:$0xff] %v290
        %307 = vst [vmem:[%s190 + $0x38] sm:$0xff] %v291
        %s308 = sand.u32 %s71, 1
        %s309 = scalar_lea.sflag [#allocation4], %s308
        %s310 = sand.u32 %s71, 1
        %s311 = smul.addr %s310, 64
        %s312 = scalar_lea.vmem [#allocation5], %s311
        %s313 = sand.u32 %s97, 1
        %s314 = scalar_lea.sflag [#allocation7], %s313
        %s315 = sand.u32 %s97, 1
        %s316 = smul.addr %s315, 64
        %s317 = scalar_lea.vmem [#allocation6], %s316
        // Predicated region
        $region33: #{tpu_custom_call.1} parent=23 // pred_check
          %p318 = pneg %p81
        $region34: #{tpu_custom_call.1} parent=23 // pred_check_branch
          %320 = sbr.rel (%p318) target = $region36
        $region35: #{tpu_custom_call.1} parent=23 // pred_region
          %322 = vsyncadd %s309, 0
          %s323 = smul.addr %s27, 8
          %s324 = smul.addr %s323, 8
          %s325 = scalar_lea.hbm %s1, %s324
          %s326 = sshll.u32 %s312, 4
          %s327 = int_to_ptr.vmem [resolvable:$true] %s326
          %s328 = sshll.u32 %s325, 4
          %s329 = int_to_ptr.hbm [resolvable:$true] %s328
          %334 = dma.vmem_to_hbm [thread:$0]  %s327, 1024, %s329, %s309, 128, 128, 8
        $region36: #{tpu_custom_call.1} parent=23 // pred_fallthru
          _
        // Predicated region
        $region37: #{tpu_custom_call.1} parent=23 // pred_check
          %p335 = pneg %p107
        $region38: #{tpu_custom_call.1} parent=23 // pred_check_branch
          %337 = sbr.rel (%p335) target = $region40
        $region39: #{tpu_custom_call.1} parent=23 // pred_region
          %339 = vsyncadd %s314, 0
          %s340 = smul.addr %s27, 8
          %s341 = smul.addr %s340, 8
          %s342 = scalar_lea.hbm %s2, %s341
          %s343 = sshll.u32 %s317, 4
          %s344 = int_to_ptr.vmem [resolvable:$true] %s343
          %s345 = sshll.u32 %s342, 4
          %s346 = int_to_ptr.hbm [resolvable:$true] %s345
          %351 = dma.vmem_to_hbm [thread:$0]  %s344, 1024, %s346, %s314, 128, 128, 8
        $region40: #{tpu_custom_call.1} parent=23 // pred_fallthru
          _
      $region24: #{tpu_custom_call.1} parent=5 // pred_fallthru
        _
      %p352 = scmp.le.s32.totalorder 2, %s18
      // Predicated region
      $region41: #{tpu_custom_call.1} parent=5 // pred_check
        %p353 = pneg %p352
      $region42: #{tpu_custom_call.1} parent=5 // pred_check_branch
        %355 = sbr.rel (%p353) target = $region44
      $region43: #{tpu_custom_call.1} parent=5 // pred_region
        %s356 = ssub.s32 %s18, 2
        // Predicated region
        $region45: #{tpu_custom_call.1} parent=43 // pred_check
          %p357 = pneg %p87
        $region46: #{tpu_custom_call.1} parent=43 // pred_check_branch
          %359 = sbr.rel (%p357) target = $region48
        $region47: #{tpu_custom_call.1} parent=43 // pred_region
          %s360 = sand.u32 %s72, 1
          %s361 = scalar_lea.sflag [#allocation4], %s360
          %s362 = sand.u32 %s72, 1
          %s363 = smul.addr %s362, 64
          %s364 = scalar_lea.vmem [#allocation5], %s363
          %366 = dma.done %s361, 1024
        $region48: #{tpu_custom_call.1} parent=43 // pred_fallthru
          _
        // Predicated region
        $region49: #{tpu_custom_call.1} parent=43 // pred_check
          %p367 = pneg %p113
        $region50: #{tpu_custom_call.1} parent=43 // pred_check_branch
          %369 = sbr.rel (%p367) target = $region52
        $region51: #{tpu_custom_call.1} parent=43 // pred_region
          %s370 = sand.u32 %s98, 1
          %s371 = scalar_lea.sflag [#allocation7], %s370
          %s372 = sand.u32 %s98, 1
          %s373 = smul.addr %s372, 64
          %s374 = scalar_lea.vmem [#allocation6], %s373
          %376 = dma.done %s371, 1024
        $region52: #{tpu_custom_call.1} parent=43 // pred_fallthru
          _
      $region44: #{tpu_custom_call.1} parent=5 // pred_fallthru
        _
    $region6: #{tpu_custom_call.1} parent=1 // loop_footer
      %s22 = sadd.s32 1, %s18
    $region7: #{tpu_custom_call.1} parent=1 // loop_footer_branch
      %17 = sbr.rel target = $region3
    $region8: #{tpu_custom_call.1} parent=1 // loop_exit
      _
    %377 = vsyncpa [#allocation3], 1
    %s378 = scalar_lea.sflag [#allocation3], 1
    %379 = vsyncpa %s378, 1
    %380 = vsyncpa [#allocation4], 1
    %s381 = scalar_lea.sflag [#allocation4], 1
    %382 = vsyncpa %s381, 1
    %383 = vsyncpa [#allocation7], 1
    %s384 = scalar_lea.sflag [#allocation7], 1
    %385 = vsyncpa %s384, 1

</llo_original>
